<compile_context>
chip_gen: v5e
topology: v5e:2x2
jax: 0.10.0
libtpu: 0.0.40
codegen_flags: <defaults>
</compile_context>

<pallas_src>
import functools

import numpy as np
import jax
import jax.numpy as jnp
from jax.experimental import pallas as pl
from jax.experimental.pallas import tpu as pltpu


MAX_BLOCK_LANES = 2048   # widest lane block per grid step (bounds patch VMEM)


def _round_up(x, m):
    return (x + m - 1) // m * m


# --------------------------------------------------------------------------
# In-kernel helpers
# --------------------------------------------------------------------------
def _im2col_3x3(feat, mask, W):
    """feat: (C, L) lane-flat feature block, mask: (9, L) halo mask.

    Returns the (9*C, L) im2col patch matrix for a 3x3 'same' conv.
    Row index = (dy*3 + dx)*C + c.  L = samples_per_block * H * W; taps never
    leak across samples because the halo mask is 0 wherever a tap would read
    outside its own sample's H x W window.
    """
    L = feat.shape[1]
    parts = []
    for dy in range(3):
        for dx in range(3):
            t = dy * 3 + dx
            offset = (dy - 1) * W + (dx - 1)       # flat-index shift of this tap
            if offset == 0:                        # center tap: no roll, mask==1
                parts.append(feat)
                continue
            shifted = pltpu.roll(feat, shift=(-offset) % L, axis=1)
            parts.append(shifted * mask[t:t + 1, :])
    return jnp.concatenate(parts, axis=0)          # (9*C, L)


def _residual_kernel(mask_ref, x_ref, w1_ref, b1_ref, w2_ref, b2_ref, out_ref,
                     *, W, fused_skip):
    # mask_ref: (9, L) f32       halo masks (per-sample, tiled across the block)
    # x_ref   : (Cin_p, L) f32   lane-flat input block (whole samples)
    # w1_ref  : (Cout_p, 9*Cin_p) bf16           conv1 weights with BN1 folded
    # b1_ref  : (Cout_p, 1) f32
    # w2_ref  : (Cout_p, 9*Cout_p [+ Cin_p]) bf16 conv2 (+ fused 1x1 skip), BN2 folded
    # b2_ref  : (Cout_p, 1) f32  (b3 folded in when fused_skip)
    # out_ref : (Cout_p, L) f32
    mask = mask_ref[...]
    x = x_ref[...]

    # conv1 + BN1 (folded) + ReLU -- one MXU matmul, bf16 operands, f32 accumulate
    p1 = _im2col_3x3(x, mask, W)                              # (9*Cin_p, L) f32
    h = jnp.dot(w1_ref[...], p1.astype(jnp.bfloat16),
                preferred_element_type=jnp.float32) + b1_ref[...]
    h = jnp.maximum(h, 0.0)                                   # (Cout_p, L) f32

    # conv2 + BN2 (folded)  [+ fused 1x1 projection skip rows]
    p2 = _im2col_3x3(h, mask, W)                              # (9*Cout_p, L) f32
    if fused_skip:
        p2 = jnp.concatenate([p2, x], axis=0)                 # (9*Cout_p+Cin_p, L)
    y = jnp.dot(w2_ref[...], p2.astype(jnp.bfloat16),
                preferred_element_type=jnp.float32) + b2_ref[...]

    if fused_skip:
        out_ref[...] = jnp.maximum(y, 0.0)                    # skip already in y
    else:
        out_ref[...] = jnp.maximum(y + x, 0.0)                # identity skip


# --------------------------------------------------------------------------
# Host-side helpers (pure glue, outside the kernel)
# --------------------------------------------------------------------------
def _make_halo_mask(H, W, samples):
    """(9, samples*H*W) f32 mask: 1 where tap (dy,dx) reads in-bounds, else 0."""
    hh, ww = np.meshgrid(np.arange(H), np.arange(W), indexing="ij")
    masks = []
    for dy in range(3):
        for dx in range(3):
            sh, sw = hh + dy - 1, ww + dx - 1
            valid = (sh >= 0) & (sh < H) & (sw >= 0) & (sw < W)
            masks.append(valid.reshape(-1).astype(np.float32))
    m = np.stack(masks, axis=0)                    # (9, H*W)
    return jnp.asarray(np.tile(m, (1, samples)))   # (9, samples*H*W)


def _fold_bn_conv3x3(w, b, bn_stats, cin_p, cout_p, eps=1e-5):
    """Fold inference-mode BN into a 3x3 conv, pad channels, matmul layout.

    w: (Cout, Cin, 3, 3), b: (Cout,), bn_stats = (gamma, beta, mean, var).
    Returns w_mat (Cout_p, 9*Cin_p) with column index (dy*3+dx)*Cin_p + c,
    and b_col (Cout_p, 1), both f32 (weights cast to bf16 by the caller).
    """
    gamma, beta, mean, var = bn_stats
    scale = gamma / jnp.sqrt(var + eps)                            # (Cout,)
    cout, cin = w.shape[0], w.shape[1]
    w_t = jnp.transpose(w, (0, 2, 3, 1)) * scale[:, None, None, None]
    w_t = jnp.pad(w_t, ((0, cout_p - cout), (0, 0), (0, 0), (0, cin_p - cin)))
    w_mat = w_t.reshape(cout_p, 9 * cin_p)
    b_col = jnp.pad((b - mean) * scale + beta, (0, cout_p - cout))[:, None]
    return w_mat.astype(jnp.float32), b_col.astype(jnp.float32)


def _choose_samples_per_block(n, hw):
    """Whole samples per lane block: as wide as MAX_BLOCK_LANES allows, but
    keep >= 2 blocks when n >= 2 so both v7x TensorCores get a grid step."""
    spb = max(1, min(n, MAX_BLOCK_LANES // max(hw, 1)))
    if n >= 2:
        spb = min(spb, max(1, (n + 1) // 2))
    if (spb * hw) % 128 != 0 and spb != n:
        spb = n          # single full-width block (block dim == full array dim)
    return spb


def residual_forward(x, params, *, use_1x1conv=False):
    """Residual block forward.  x: (N, Cin, H, W) -> (N, Cout, H, W)."""
    N, Cin, H, W = x.shape
    HW = H * W
    Cout = params["w1"].shape[0]
    if not use_1x1conv:
        assert Cin == Cout, "identity skip requires input_channels == num_channels"

    # Sublane-aligned channel counts (padding columns/rows are zero).
    cin_p = _round_up(Cin, 8)
    cout_p = _round_up(Cout, 8)

    # Fold BN into the convs, pad channels, cast MXU operands to bf16.
    w1m, b1m = _fold_bn_conv3x3(params["w1"], params["b1"], params["bn1"],
                                cin_p, cout_p)
    w2m, b2m = _fold_bn_conv3x3(params["w2"], params["b2"], params["bn2"],
                                cout_p, cout_p)
    if use_1x1conv:
        # Fuse the 1x1 projection skip into the conv2 matmul.
        w3m = jnp.pad(params["w3"].reshape(Cout, Cin),
                      ((0, cout_p - Cout), (0, cin_p - Cin)))
        b3m = jnp.pad(params["b3"], (0, cout_p - Cout))[:, None]
        w2m = jnp.concatenate([w2m, w3m], axis=1)
        b2m = b2m + b3m.astype(jnp.float32)
    w1m = w1m.astype(jnp.bfloat16)
    w2m = w2m.astype(jnp.bfloat16)

    # Batch folded into the lane axis: (Cin_p, N_pad*HW), whole-sample blocks.
    spb = _choose_samples_per_block(N, HW)
    nb = pl.cdiv(N, spb)
    n_pad = nb * spb
    L = spb * HW
    x_p = jnp.pad(x, ((0, n_pad - N), (0, cin_p - Cin), (0, 0), (0, 0)))
    x_flat = jnp.transpose(x_p, (1, 0, 2, 3)).reshape(cin_p, n_pad * HW)

    mask = _make_halo_mask(H, W, spb)              # (9, L), constant over grid

    kernel = functools.partial(_residual_kernel, W=W, fused_skip=use_1x1conv)
    out = pl.pallas_call(
        kernel,
        out_shape=jax.ShapeDtypeStruct((cout_p, n_pad * HW), jnp.float32),
        grid=(nb,),
        in_specs=[
            pl.BlockSpec((9, L), lambda g: (0, 0)),
            pl.BlockSpec((cin_p, L), lambda g: (0, g)),
            pl.BlockSpec(w1m.shape, lambda g: (0, 0)),
            pl.BlockSpec(b1m.shape, lambda g: (0, 0)),
            pl.BlockSpec(w2m.shape, lambda g: (0, 0)),
            pl.BlockSpec(b2m.shape, lambda g: (0, 0)),
        ],
        out_specs=pl.BlockSpec((cout_p, L), lambda g: (0, g)),
        compiler_params=pltpu.CompilerParams(
            dimension_semantics=("parallel",),
            vmem_limit_bytes=32 * 1024 * 1024,
        ),
    )(mask, x_flat, w1m, b1m, w2m, b2m)

    out = out.reshape(cout_p, n_pad, H, W).transpose(1, 0, 2, 3)
    return out[:N, :Cout]


# --------------------------------------------------------------------------
# Pure-JAX reference (independent: uses lax.conv) and parameter init
# --------------------------------------------------------------------------
def residual_reference(x, params, *, use_1x1conv=False, eps=1e-5):
    def conv(x, w, b):
        pad = w.shape[2] // 2
        y = jax.lax.conv_general_dilated(
            x, w, window_strides=(1, 1), padding=[(pad, pad), (pad, pad)],
            dimension_numbers=("NCHW", "OIHW", "NCHW"),
            precision=jax.lax.Precision.HIGHEST)
        return y + b[None, :, None, None]

    def bn(x, stats):
        gamma, beta, mean, var = stats
        inv = gamma / jnp.sqrt(var + eps)
        return (x - mean[None, :, None, None]) * inv[None, :, None, None] \
            + beta[None, :, None, None]

    y = jax.nn.relu(bn(conv(x, params["w1"], params["b1"]), params["bn1"]))
    y = bn(conv(y, params["w2"], params["b2"]), params["bn2"])
    skip = conv(x, params["w3"], params["b3"]) if use_1x1conv else x
    return jax.nn.relu(y + skip)


def init_residual_params(key, cin, cout, use_1x1conv=False):
    ks = jax.random.split(key, 8)

    def bn_stats(k):
        kg, kb, km, kv = jax.random.split(k, 4)
        gamma = 1.0 + 0.2 * jax.random.normal(kg, (cout,), jnp.float32)
        beta = 0.1 * jax.random.normal(kb, (cout,), jnp.float32)
        mean = 0.1 * jax.random.normal(km, (cout,), jnp.float32)
        var = jax.random.uniform(kv, (cout,), jnp.float32, 0.5, 1.5)
        return (gamma, beta, mean, var)

    params = {
        "w1": 0.1 * jax.random.normal(ks[0], (cout, cin, 3, 3), jnp.float32),
        "b1": 0.1 * jax.random.normal(ks[1], (cout,), jnp.float32),
        "bn1": bn_stats(ks[2]),
        "w2": 0.1 * jax.random.normal(ks[3], (cout, cout, 3, 3), jnp.float32),
        "b2": 0.1 * jax.random.normal(ks[4], (cout,), jnp.float32),
        "bn2": bn_stats(ks[5]),
    }
    if use_1x1conv:
        params["w3"] = 0.1 * jax.random.normal(ks[6], (cout, cin, 1, 1), jnp.float32)
        params["b3"] = 0.1 * jax.random.normal(ks[7], (cout,), jnp.float32)
    return params


if __name__ == "__main__":
    key = jax.random.PRNGKey(0)
    kx, kp1, kx2, kp2 = jax.random.split(key, 4)

    # Default module config: use_1x1conv=False, strides=1 (identity skip).
    N, C, H, W = 2, 8, 16, 16
    x = jax.random.normal(kx, (N, C, H, W), jnp.float32)
    params = init_residual_params(kp1, C, C, use_1x1conv=False)
    out = jax.block_until_ready(residual_forward(x, params, use_1x1conv=False))
    ref = residual_reference(x, params, use_1x1conv=False)
    assert out.shape == (N, C, H, W), out.shape
    np.testing.assert_allclose(np.asarray(out), np.asarray(ref), rtol=5e-2, atol=5e-2)

    # Projection-shortcut config: use_1x1conv=True (channel change 4 -> 8).
    Cin2, Cout2 = 4, 8
    x2 = jax.random.normal(kx2, (N, Cin2, H, W), jnp.float32)
    params2 = init_residual_params(kp2, Cin2, Cout2, use_1x1conv=True)
    out2 = jax.block_until_ready(residual_forward(x2, params2, use_1x1conv=True))
    ref2 = residual_reference(x2, params2, use_1x1conv=True)
    assert out2.shape == (N, Cout2, H, W), out2.shape
    np.testing.assert_allclose(np.asarray(out2), np.asarray(ref2), rtol=5e-2, atol=5e-2)

    print("KERNEL_OK")
</pallas_src>

<mosaic_0001>
module attributes {stable_mosaic.version = 11 : i64} {
  func.func @_residual_kernel(%arg0: i32, %arg1: memref<9x256xf32, #tpu.memory_space<vmem>>, %arg2: memref<8x256xf32, #tpu.memory_space<vmem>>, %arg3: memref<8x72xbf16, #tpu.memory_space<vmem>>, %arg4: memref<8x1xf32, #tpu.memory_space<vmem>>, %arg5: memref<8x72xbf16, #tpu.memory_space<vmem>>, %arg6: memref<8x1xf32, #tpu.memory_space<vmem>>, %arg7: memref<8x256xf32, #tpu.memory_space<vmem>>) attributes {dimension_semantics = [#tpu.dimension_semantics<parallel>], iteration_bounds = array<i64: 2>, scalar_prefetch = 0 : i64, scratch_operands = 0 : i64, tpu.core_type = #tpu.core_type<tc>, window_params = [{pipeline_mode = #tpu.pipeline_mode<synchronous>, transform_indices = @transform_0, window_bounds = array<i64: 9, 256>}, {transform_indices = @transform_1, window_bounds = array<i64: 8, 256>}, {pipeline_mode = #tpu.pipeline_mode<synchronous>, transform_indices = @transform_2, window_bounds = array<i64: 8, 72>}, {pipeline_mode = #tpu.pipeline_mode<synchronous>, transform_indices = @transform_3, window_bounds = array<i64: 8, 1>}, {pipeline_mode = #tpu.pipeline_mode<synchronous>, transform_indices = @transform_4, window_bounds = array<i64: 8, 72>}, {pipeline_mode = #tpu.pipeline_mode<synchronous>, transform_indices = @transform_5, window_bounds = array<i64: 8, 1>}, {transform_indices = @transform_6, window_bounds = array<i64: 8, 256>}]} {
    %c0 = arith.constant 0 : index
    %c0_0 = arith.constant 0 : index
    %0 = vector.load %arg1[%c0, %c0_0] : memref<9x256xf32, #tpu.memory_space<vmem>>, vector<9x256xf32>
    %c0_1 = arith.constant 0 : index
    %c0_2 = arith.constant 0 : index
    %1 = vector.load %arg2[%c0_1, %c0_2] : memref<8x256xf32, #tpu.memory_space<vmem>>, vector<8x256xf32>
    %c17_i32 = arith.constant 17 : i32
    %2 = tpu.dynamic_rotate %1 by %c17_i32 dim 1 : vector<8x256xf32>, i32 -> vector<8x256xf32>
    %3 = vector.extract_strided_slice %0 {offsets = [0, 0], sizes = [1, 256], strides = [1, 1]} : vector<9x256xf32> to vector<1x256xf32>
    %4 = vector.broadcast %3 : vector<1x256xf32> to vector<8x256xf32>
    %5 = arith.mulf %2, %4 : vector<8x256xf32>
    %c16_i32 = arith.constant 16 : i32
    %6 = tpu.dynamic_rotate %1 by %c16_i32 dim 1 : vector<8x256xf32>, i32 -> vector<8x256xf32>
    %7 = vector.extract_strided_slice %0 {offsets = [1, 0], sizes = [1, 256], strides = [1, 1]} : vector<9x256xf32> to vector<1x256xf32>
    %8 = vector.broadcast %7 : vector<1x256xf32> to vector<8x256xf32>
    %9 = arith.mulf %6, %8 : vector<8x256xf32>
    %c15_i32 = arith.constant 15 : i32
    %10 = tpu.dynamic_rotate %1 by %c15_i32 dim 1 : vector<8x256xf32>, i32 -> vector<8x256xf32>
    %11 = vector.extract_strided_slice %0 {offsets = [2, 0], sizes = [1, 256], strides = [1, 1]} : vector<9x256xf32> to vector<1x256xf32>
    %12 = vector.broadcast %11 : vector<1x256xf32> to vector<8x256xf32>
    %13 = arith.mulf %10, %12 : vector<8x256xf32>
    %c1_i32 = arith.constant 1 : i32
    %14 = tpu.dynamic_rotate %1 by %c1_i32 dim 1 : vector<8x256xf32>, i32 -> vector<8x256xf32>
    %15 = vector.extract_strided_slice %0 {offsets = [3, 0], sizes = [1, 256], strides = [1, 1]} : vector<9x256xf32> to vector<1x256xf32>
    %16 = vector.broadcast %15 : vector<1x256xf32> to vector<8x256xf32>
    %17 = arith.mulf %14, %16 : vector<8x256xf32>
    %c255_i32 = arith.constant 255 : i32
    %18 = tpu.dynamic_rotate %1 by %c255_i32 dim 1 : vector<8x256xf32>, i32 -> vector<8x256xf32>
    %19 = vector.extract_strided_slice %0 {offsets = [5, 0], sizes = [1, 256], strides = [1, 1]} : vector<9x256xf32> to vector<1x256xf32>
    %20 = vector.broadcast %19 : vector<1x256xf32> to vector<8x256xf32>
    %21 = arith.mulf %18, %20 : vector<8x256xf32>
    %c241_i32 = arith.constant 241 : i32
    %22 = tpu.dynamic_rotate %1 by %c241_i32 dim 1 : vector<8x256xf32>, i32 -> vector<8x256xf32>
    %23 = vector.extract_strided_slice %0 {offsets = [6, 0], sizes = [1, 256], strides = [1, 1]} : vector<9x256xf32> to vector<1x256xf32>
    %24 = vector.broadcast %23 : vector<1x256xf32> to vector<8x256xf32>
    %25 = arith.mulf %22, %24 : vector<8x256xf32>
    %c240_i32 = arith.constant 240 : i32
    %26 = tpu.dynamic_rotate %1 by %c240_i32 dim 1 : vector<8x256xf32>, i32 -> vector<8x256xf32>
    %27 = vector.extract_strided_slice %0 {offsets = [7, 0], sizes = [1, 256], strides = [1, 1]} : vector<9x256xf32> to vector<1x256xf32>
    %28 = vector.broadcast %27 : vector<1x256xf32> to vector<8x256xf32>
    %29 = arith.mulf %26, %28 : vector<8x256xf32>
    %c239_i32 = arith.constant 239 : i32
    %30 = tpu.dynamic_rotate %1 by %c239_i32 dim 1 : vector<8x256xf32>, i32 -> vector<8x256xf32>
    %31 = vector.extract_strided_slice %0 {offsets = [8, 0], sizes = [1, 256], strides = [1, 1]} : vector<9x256xf32> to vector<1x256xf32>
    %32 = vector.broadcast %31 : vector<1x256xf32> to vector<8x256xf32>
    %33 = arith.mulf %30, %32 : vector<8x256xf32>
    %34 = tpu.concatenate %5, %9, %13, %17, %1, %21, %25, %29, %33 in 0 : vector<8x256xf32>, vector<8x256xf32>, vector<8x256xf32>, vector<8x256xf32>, vector<8x256xf32>, vector<8x256xf32>, vector<8x256xf32>, vector<8x256xf32>, vector<8x256xf32> -> vector<72x256xf32>
    %c0_3 = arith.constant 0 : index
    %c0_4 = arith.constant 0 : index
    %35 = vector.load %arg3[%c0_3, %c0_4] : memref<8x72xbf16, #tpu.memory_space<vmem>>, vector<8x72xbf16>
    %36 = arith.truncf %34 : vector<72x256xf32> to vector<72x256xbf16>
    %cst = arith.constant dense<0.000000e+00> : vector<8x256xf32>
    %37 = tpu.matmul %35, %36, %cst {dimension_numbers = #tpu.dot_dimension_numbers<[1], [0], [0], [1], [0, 0, 1, 1], [], []>} : vector<8x72xbf16>, vector<72x256xbf16>, vector<8x256xf32> -> vector<8x256xf32>
    %c0_5 = arith.constant 0 : index
    %c0_6 = arith.constant 0 : index
    %38 = vector.load %arg4[%c0_5, %c0_6] : memref<8x1xf32, #tpu.memory_space<vmem>>, vector<8x1xf32>
    %39 = vector.broadcast %38 : vector<8x1xf32> to vector<8x256xf32>
    %40 = arith.addf %37, %39 : vector<8x256xf32>
    %cst_7 = arith.constant 0.000000e+00 : f32
    %41 = vector.broadcast %cst_7 : f32 to vector<8x256xf32>
    %42 = arith.maximumf %40, %41 : vector<8x256xf32>
    %c17_i32_8 = arith.constant 17 : i32
    %43 = tpu.dynamic_rotate %42 by %c17_i32_8 dim 1 : vector<8x256xf32>, i32 -> vector<8x256xf32>
    %44 = vector.extract_strided_slice %0 {offsets = [0, 0], sizes = [1, 256], strides = [1, 1]} : vector<9x256xf32> to vector<1x256xf32>
    %45 = vector.broadcast %44 : vector<1x256xf32> to vector<8x256xf32>
    %46 = arith.mulf %43, %45 : vector<8x256xf32>
    %c16_i32_9 = arith.constant 16 : i32
    %47 = tpu.dynamic_rotate %42 by %c16_i32_9 dim 1 : vector<8x256xf32>, i32 -> vector<8x256xf32>
    %48 = vector.extract_strided_slice %0 {offsets = [1, 0], sizes = [1, 256], strides = [1, 1]} : vector<9x256xf32> to vector<1x256xf32>
    %49 = vector.broadcast %48 : vector<1x256xf32> to vector<8x256xf32>
    %50 = arith.mulf %47, %49 : vector<8x256xf32>
    %c15_i32_10 = arith.constant 15 : i32
    %51 = tpu.dynamic_rotate %42 by %c15_i32_10 dim 1 : vector<8x256xf32>, i32 -> vector<8x256xf32>
    %52 = vector.extract_strided_slice %0 {offsets = [2, 0], sizes = [1, 256], strides = [1, 1]} : vector<9x256xf32> to vector<1x256xf32>
    %53 = vector.broadcast %52 : vector<1x256xf32> to vector<8x256xf32>
    %54 = arith.mulf %51, %53 : vector<8x256xf32>
    %c1_i32_11 = arith.constant 1 : i32
    %55 = tpu.dynamic_rotate %42 by %c1_i32_11 dim 1 : vector<8x256xf32>, i32 -> vector<8x256xf32>
    %56 = vector.extract_strided_slice %0 {offsets = [3, 0], sizes = [1, 256], strides = [1, 1]} : vector<9x256xf32> to vector<1x256xf32>
    %57 = vector.broadcast %56 : vector<1x256xf32> to vector<8x256xf32>
    %58 = arith.mulf %55, %57 : vector<8x256xf32>
    %c255_i32_12 = arith.constant 255 : i32
    %59 = tpu.dynamic_rotate %42 by %c255_i32_12 dim 1 : vector<8x256xf32>, i32 -> vector<8x256xf32>
    %60 = vector.extract_strided_slice %0 {offsets = [5, 0], sizes = [1, 256], strides = [1, 1]} : vector<9x256xf32> to vector<1x256xf32>
    %61 = vector.broadcast %60 : vector<1x256xf32> to vector<8x256xf32>
    %62 = arith.mulf %59, %61 : vector<8x256xf32>
    %c241_i32_13 = arith.constant 241 : i32
    %63 = tpu.dynamic_rotate %42 by %c241_i32_13 dim 1 : vector<8x256xf32>, i32 -> vector<8x256xf32>
    %64 = vector.extract_strided_slice %0 {offsets = [6, 0], sizes = [1, 256], strides = [1, 1]} : vector<9x256xf32> to vector<1x256xf32>
    %65 = vector.broadcast %64 : vector<1x256xf32> to vector<8x256xf32>
    %66 = arith.mulf %63, %65 : vector<8x256xf32>
    %c240_i32_14 = arith.constant 240 : i32
    %67 = tpu.dynamic_rotate %42 by %c240_i32_14 dim 1 : vector<8x256xf32>, i32 -> vector<8x256xf32>
    %68 = vector.extract_strided_slice %0 {offsets = [7, 0], sizes = [1, 256], strides = [1, 1]} : vector<9x256xf32> to vector<1x256xf32>
    %69 = vector.broadcast %68 : vector<1x256xf32> to vector<8x256xf32>
    %70 = arith.mulf %67, %69 : vector<8x256xf32>
    %c239_i32_15 = arith.constant 239 : i32
    %71 = tpu.dynamic_rotate %42 by %c239_i32_15 dim 1 : vector<8x256xf32>, i32 -> vector<8x256xf32>
    %72 = vector.extract_strided_slice %0 {offsets = [8, 0], sizes = [1, 256], strides = [1, 1]} : vector<9x256xf32> to vector<1x256xf32>
    %73 = vector.broadcast %72 : vector<1x256xf32> to vector<8x256xf32>
    %74 = arith.mulf %71, %73 : vector<8x256xf32>
    %75 = tpu.concatenate %46, %50, %54, %58, %42, %62, %66, %70, %74 in 0 : vector<8x256xf32>, vector<8x256xf32>, vector<8x256xf32>, vector<8x256xf32>, vector<8x256xf32>, vector<8x256xf32>, vector<8x256xf32>, vector<8x256xf32>, vector<8x256xf32> -> vector<72x256xf32>
    %c0_16 = arith.constant 0 : index
    %c0_17 = arith.constant 0 : index
    %76 = vector.load %arg5[%c0_16, %c0_17] : memref<8x72xbf16, #tpu.memory_space<vmem>>, vector<8x72xbf16>
    %77 = arith.truncf %75 : vector<72x256xf32> to vector<72x256xbf16>
    %cst_18 = arith.constant dense<0.000000e+00> : vector<8x256xf32>
    %78 = tpu.matmul %76, %77, %cst_18 {dimension_numbers = #tpu.dot_dimension_numbers<[1], [0], [0], [1], [0, 0, 1, 1], [], []>} : vector<8x72xbf16>, vector<72x256xbf16>, vector<8x256xf32> -> vector<8x256xf32>
    %c0_19 = arith.constant 0 : index
    %c0_20 = arith.constant 0 : index
    %79 = vector.load %arg6[%c0_19, %c0_20] : memref<8x1xf32, #tpu.memory_space<vmem>>, vector<8x1xf32>
    %80 = vector.broadcast %79 : vector<8x1xf32> to vector<8x256xf32>
    %81 = arith.addf %78, %80 : vector<8x256xf32>
    %82 = arith.addf %81, %1 : vector<8x256xf32>
    %cst_21 = arith.constant 0.000000e+00 : f32
    %83 = vector.broadcast %cst_21 : f32 to vector<8x256xf32>
    %84 = arith.maximumf %82, %83 : vector<8x256xf32>
    %c0_22 = arith.constant 0 : index
    %c0_23 = arith.constant 0 : index
    %85 = vector.load %arg7[%c0_22, %c0_23] : memref<8x256xf32, #tpu.memory_space<vmem>>, vector<8x256xf32>
    tpu.vector_store %arg7[%c0_22, %c0_23], %84 {strides = array<i32>} : memref<8x256xf32, #tpu.memory_space<vmem>>, vector<8x256xf32>,
    return
  }
  func.func @transform_0(%arg0: i32) -> (i32, i32) {
    %c0_i32 = arith.constant 0 : i32
    %c0_i32_0 = arith.constant 0 : i32
    %c0_i32_1 = arith.constant 0 : i32
    return %c0_i32, %c0_i32_0 : i32, i32
  }
  func.func @transform_1(%arg0: i32) -> (i32, i32) {
    %c0_i32 = arith.constant 0 : i32
    %c0_i32_0 = arith.constant 0 : i32
    return %c0_i32, %arg0 : i32, i32
  }
  func.func @transform_2(%arg0: i32) -> (i32, i32) {
    %c0_i32 = arith.constant 0 : i32
    %c0_i32_0 = arith.constant 0 : i32
    %c0_i32_1 = arith.constant 0 : i32
    return %c0_i32, %c0_i32_0 : i32, i32
  }
  func.func @transform_3(%arg0: i32) -> (i32, i32) {
    %c0_i32 = arith.constant 0 : i32
    %c0_i32_0 = arith.constant 0 : i32
    %c0_i32_1 = arith.constant 0 : i32
    return %c0_i32, %c0_i32_0 : i32, i32
  }
  func.func @transform_4(%arg0: i32) -> (i32, i32) {
    %c0_i32 = arith.constant 0 : i32
    %c0_i32_0 = arith.constant 0 : i32
    %c0_i32_1 = arith.constant 0 : i32
    return %c0_i32, %c0_i32_0 : i32, i32
  }
  func.func @transform_5(%arg0: i32) -> (i32, i32) {
    %c0_i32 = arith.constant 0 : i32
    %c0_i32_0 = arith.constant 0 : i32
    %c0_i32_1 = arith.constant 0 : i32
    return %c0_i32, %c0_i32_0 : i32, i32
  }
  func.func @transform_6(%arg0: i32) -> (i32, i32) {
    %c0_i32 = arith.constant 0 : i32
    %c0_i32_0 = arith.constant 0 : i32
    return %c0_i32, %arg0 : i32, i32
  }
}

</mosaic_0001>

<llo_original>
// kernel: tpu_custom_call.1
$region0: #{tpu_custom_call.1}
  #allocation0 [shape = 'u32[]', space=smem, size = 0x4, offset = 0x4, fixed_abs, tag = 'smem constant byte address 0x4 - core index']
  #allocation1 [shape = 'u32[72,128]{1,0:T(1,128)}', space=vmem, size = 0x9000, scoped, tag = 'internal scratch']
  %s0 = inlined_call_operand.hbm [shape: f32[9,256], index: 0, kind: input, shape index: {}]
  %s1 = inlined_call_operand.hbm [shape: f32[8,512], index: 1, kind: input, shape index: {}]
  %s2 = inlined_call_operand.vmem [shape: bf16[8,72], index: 2, kind: input, shape index: {}]
  %s3 = inlined_call_operand.vmem [shape: f32[8,1], index: 3, kind: input, shape index: {}]
  %s4 = inlined_call_operand.vmem [shape: bf16[8,72], index: 4, kind: input, shape index: {}]
  %s5 = inlined_call_operand.vmem [shape: f32[8,1], index: 5, kind: input, shape index: {}]
  %s6 = inlined_call_operand.hbm [shape: f32[8,512], index: 6, kind: output, shape index: {}]
  %s7 = sld [smem:[#allocation0]]
  $region65: #{tpu_custom_call.1} parent=0
    _
  %s9 = ssub.s32 1, %s7
  %s10 = scalar_select 0, %s9, %s7
  $region1: #{tpu_custom_call.1} parent=0
    #allocation2 [shape = 'u8[16384]{0}', space=vmem, size = 0x4000, scoped, tag = 'input window, operand 0, single buffered']
    #allocation3 [shape = 's32[2]{0}', space=sflag, size = 0x8, scoped, tag = 'scoped memory for tpu_custom_call.1']
    #allocation4 [shape = 's32[2]{0}', space=sflag, size = 0x8, scoped, tag = 'scoped memory for tpu_custom_call.1']
    #allocation5 [shape = 'u8[16384]{0}', space=vmem, size = 0x4000, scoped, tag = 'input window, operand 1']
    #allocation6 [shape = 's32[2]{0}', space=sflag, size = 0x8, scoped, tag = 'scoped memory for tpu_custom_call.1']
    #allocation7 [shape = 'u8[16384]{0}', space=vmem, size = 0x4000, scoped, tag = 'output window, operand 0']
    %11 = vsyncpa [#allocation3], 0
    %12 = vsyncpa [#allocation6], 0
    %s13 = scalar_lea.sflag [#allocation6], 1
    %14 = vsyncpa %s13, 0
    %15 = vsyncpa [#allocation4], 0
    %s16 = scalar_lea.sflag [#allocation4], 1
    %17 = vsyncpa %s16, 0
    loop: start=0, step=1, limit=4
    $region2: #{tpu_custom_call.1} parent=1 // loop_pre_header
      _
    $region3: #{tpu_custom_call.1} parent=1 // loop_header
      %s19 = sphi 0, %s23
      %p20 = scmp.ge.s32.totalorder %s19, 4
      %s27 = sphi 0, %s27
      %s29 = sphi 0, %s27
      %s30 = sphi 0, %s29
      %s44 = sphi 0, %s30
      %s50 = sphi 0, %s52
      %s53 = sphi 0, %s50
      %s54 = sphi 0, %s53
      %s70 = sphi 0, %s54
      %s74 = sphi 0, %s74
      %s76 = sphi 0, %s74
      %s77 = sphi 0, %s76
      %s91 = sphi 0, %s77
      %s95 = sphi 0, %s95
      %s97 = sphi 0, %s95
      %s98 = sphi 0, %s97
      %s112 = sphi 0, %s98
      %s116 = sphi 0, %s116
      %s118 = sphi 0, %s116
      %s119 = sphi 0, %s118
      %s133 = sphi 0, %s119
      %s137 = sphi 0, %s137
      %s139 = sphi 0, %s137
      %s140 = sphi 0, %s139
      %s154 = sphi 0, %s140
      %s160 = sphi 0, %s162
      %s163 = sphi 0, %s160
      %s164 = sphi 0, %s163
      %s180 = sphi 0, %s164
    $region4: #{tpu_custom_call.1} parent=1 // loop_header_branch
      %22 = sbr.rel (%p20) target = $region8
    $region5: #{tpu_custom_call.1} parent=1 // loop_body
      %s24 = ssub.s32 %s19, 1
      %s25 = ssub.s32 %s19, 2
      %s26 = sadd.s32 %s19, 1
      %s28 = sadd.s32 %s27, 1
      %p31 = scmp.eq.s32.totalorder %s19, 1
      %p32 = scmp.ne.s32.totalorder %s27, %s29
      %p33 = scmp.eq.s32.totalorder %s19, 0
      %p34 = por %p32, %p33
      %p35 = scmp.ne.s32.totalorder %s27, %s29
      %p36 = scmp.eq.s32.totalorder %s24, 1
      %p37 = por %p35, %p36
      %p38 = scmp.ne.s32.totalorder %s29, %s30
      %p39 = scmp.eq.s32.totalorder %s24, 0
      %p40 = por %p38, %p39
      %p41 = scmp.ne.s32.totalorder %s29, %s30
      %p42 = scmp.eq.s32.totalorder %s25, 1
      %p43 = por %p41, %p42
      %p45 = scmp.ne.s32.totalorder %s30, %s44
      %p46 = scmp.eq.s32.totalorder %s25, 0
      %p47 = por %p45, %p46
      %s48 = ssub.s32 %s19, %s26
      %p49 = scmp.eq.s32.totalorder %s48, 0
      %s51 = sadd.s32 %s50, 1
      %s52 = scalar_select %p49, %s50, %s51
      %p55 = pneg %p49
      %p56 = scmp.eq.s32.totalorder %s19, 1
      %p57 = por %p55, %p56
      %p58 = scmp.ne.s32.totalorder %s50, %s53
      %p59 = scmp.eq.s32.totalorder %s19, 0
      %p60 = por %p58, %p59
      %p61 = scmp.ne.s32.totalorder %s50, %s53
      %p62 = scmp.eq.s32.totalorder %s24, 1
      %p63 = por %p61, %p62
      %p64 = scmp.ne.s32.totalorder %s53, %s54
      %p65 = scmp.eq.s32.totalorder %s24, 0
      %p66 = por %p64, %p65
      %p67 = scmp.ne.s32.totalorder %s53, %s54
      %p68 = scmp.eq.s32.totalorder %s25, 1
      %p69 = por %p67, %p68
      %p71 = scmp.ne.s32.totalorder %s54, %s70
      %p72 = scmp.eq.s32.totalorder %s25, 0
      %p73 = por %p71, %p72
      %s75 = sadd.s32 %s74, 1
      %p78 = scmp.eq.s32.totalorder %s19, 1
      %p79 = scmp.ne.s32.totalorder %s74, %s76
      %p80 = scmp.eq.s32.totalorder %s19, 0
      %p81 = por %p79, %p80
      %p82 = scmp.ne.s32.totalorder %s74, %s76
      %p83 = scmp.eq.s32.totalorder %s24, 1
      %p84 = por %p82, %p83
      %p85 = scmp.ne.s32.totalorder %s76, %s77
      %p86 = scmp.eq.s32.totalorder %s24, 0
      %p87 = por %p85, %p86
      %p88 = scmp.ne.s32.totalorder %s76, %s77
      %p89 = scmp.eq.s32.totalorder %s25, 1
      %p90 = por %p88, %p89
      %p92 = scmp.ne.s32.totalorder %s77, %s91
      %p93 = scmp.eq.s32.totalorder %s25, 0
      %p94 = por %p92, %p93
      %s96 = sadd.s32 %s95, 1
      %p99 = scmp.eq.s32.totalorder %s19, 1
      %p100 = scmp.ne.s32.totalorder %s95, %s97
      %p101 = scmp.eq.s32.totalorder %s19, 0
      %p102 = por %p100, %p101
      %p103 = scmp.ne.s32.totalorder %s95, %s97
      %p104 = scmp.eq.s32.totalorder %s24, 1
      %p105 = por %p103, %p104
      %p106 = scmp.ne.s32.totalorder %s97, %s98
      %p107 = scmp.eq.s32.totalorder %s24, 0
      %p108 = por %p106, %p107
      %p109 = scmp.ne.s32.totalorder %s97, %s98
      %p110 = scmp.eq.s32.totalorder %s25, 1
      %p111 = por %p109, %p110
      %p113 = scmp.ne.s32.totalorder %s98, %s112
      %p114 = scmp.eq.s32.totalorder %s25, 0
      %p115 = por %p113, %p114
      %s117 = sadd.s32 %s116, 1
      %p120 = scmp.eq.s32.totalorder %s19, 1
      %p121 = scmp.ne.s32.totalorder %s116, %s118
      %p122 = scmp.eq.s32.totalorder %s19, 0
      %p123 = por %p121, %p122
      %p124 = scmp.ne.s32.totalorder %s116, %s118
      %p125 = scmp.eq.s32.totalorder %s24, 1
      %p126 = por %p124, %p125
      %p127 = scmp.ne.s32.totalorder %s118, %s119
      %p128 = scmp.eq.s32.totalorder %s24, 0
      %p129 = por %p127, %p128
      %p130 = scmp.ne.s32.totalorder %s118, %s119
      %p131 = scmp.eq.s32.totalorder %s25, 1
      %p132 = por %p130, %p131
      %p134 = scmp.ne.s32.totalorder %s119, %s133
      %p135 = scmp.eq.s32.totalorder %s25, 0
      %p136 = por %p134, %p135
      %s138 = sadd.s32 %s137, 1
      %p141 = scmp.eq.s32.totalorder %s19, 1
      %p142 = scmp.ne.s32.totalorder %s137, %s139
      %p143 = scmp.eq.s32.totalorder %s19, 0
      %p144 = por %p142, %p143
      %p145 = scmp.ne.s32.totalorder %s137, %s139
      %p146 = scmp.eq.s32.totalorder %s24, 1
      %p147 = por %p145, %p146
      %p148 = scmp.ne.s32.totalorder %s139, %s140
      %p149 = scmp.eq.s32.totalorder %s24, 0
      %p150 = por %p148, %p149
      %p151 = scmp.ne.s32.totalorder %s139, %s140
      %p152 = scmp.eq.s32.totalorder %s25, 1
      %p153 = por %p151, %p152
      %p155 = scmp.ne.s32.totalorder %s140, %s154
      %p156 = scmp.eq.s32.totalorder %s25, 0
      %p157 = por %p155, %p156
      %s158 = ssub.s32 %s19, %s26
      %p159 = scmp.eq.s32.totalorder %s158, 0
      %s161 = sadd.s32 %s160, 1
      %s162 = scalar_select %p159, %s160, %s161
      %p165 = pneg %p159
      %p166 = scmp.eq.s32.totalorder %s19, 1
      %p167 = por %p165, %p166
      %p168 = scmp.ne.s32.totalorder %s160, %s163
      %p169 = scmp.eq.s32.totalorder %s19, 0
      %p170 = por %p168, %p169
      %p171 = scmp.ne.s32.totalorder %s160, %s163
      %p172 = scmp.eq.s32.totalorder %s24, 1
      %p173 = por %p171, %p172
      %p174 = scmp.ne.s32.totalorder %s163, %s164
      %p175 = scmp.eq.s32.totalorder %s24, 0
      %p176 = por %p174, %p175
      %p177 = scmp.ne.s32.totalorder %s163, %s164
      %p178 = scmp.eq.s32.totalorder %s25, 1
      %p179 = por %p177, %p178
      %p181 = scmp.ne.s32.totalorder %s164, %s180
      %p182 = scmp.eq.s32.totalorder %s25, 0
      %p183 = por %p181, %p182
      %p184 = scmp.le.s32.totalorder 1, %s19
      %p185 = scmp.lt.s32.totalorder %s19, 3
      %p186 = pnand %p184, %p185
      %p187 = pneg %p186
      // Predicated region
      $region9: #{tpu_custom_call.1} parent=5 // pred_check
        _
      $region10: #{tpu_custom_call.1} parent=5 // pred_check_branch
        %189 = sbr.rel (%p186) target = $region12
      $region11: #{tpu_custom_call.1} parent=5 // pred_region
        %s190 = ssub.s32 %s19, 1
        // Predicated region
        $region13: #{tpu_custom_call.1} parent=11 // pred_check
          %p191 = pneg %p40
        $region14: #{tpu_custom_call.1} parent=11 // pred_check_branch
          %193 = sbr.rel (%p191) target = $region16
        $region15: #{tpu_custom_call.1} parent=11 // pred_region
          %195 = vsyncadd [#allocation3], 0
          %s196 = sshll.u32 %s0, 4
          %s197 = int_to_ptr.hbm [resolvable:$true] %s196
          %s198 = sshll.u32 [#allocation2], 4
          %s199 = int_to_ptr.vmem [resolvable:$true] %s198
          %204 = dma.hbm_to_vmem [thread:$0]  %s197, 512, %s199, [#allocation3], 256, 256, 16
        $region16: #{tpu_custom_call.1} parent=11 // pred_fallthru
          _
        // Predicated region
        $region17: #{tpu_custom_call.1} parent=11 // pred_check
          %p205 = pneg %p87
        $region18: #{tpu_custom_call.1} parent=11 // pred_check_branch
          %207 = sbr.rel (%p205) target = $region20
        $region19: #{tpu_custom_call.1} parent=11 // pred_region
          _
        $region20: #{tpu_custom_call.1} parent=11 // pred_fallthru
          _
        // Predicated region
        $region21: #{tpu_custom_call.1} parent=11 // pred_check
          %p208 = pneg %p108
        $region22: #{tpu_custom_call.1} parent=11 // pred_check_branch
          %210 = sbr.rel (%p208) target = $region24
        $region23: #{tpu_custom_call.1} parent=11 // pred_region
          _
        $region24: #{tpu_custom_call.1} parent=11 // pred_fallthru
          _
        // Predicated region
        $region25: #{tpu_custom_call.1} parent=11 // pred_check
          %p211 = pneg %p129
        $region26: #{tpu_custom_call.1} parent=11 // pred_check_branch
          %213 = sbr.rel (%p211) target = $region28
        $region27: #{tpu_custom_call.1} parent=11 // pred_region
          _
        $region28: #{tpu_custom_call.1} parent=11 // pred_fallthru
          _
        // Predicated region
        $region29: #{tpu_custom_call.1} parent=11 // pred_check
          %p214 = pneg %p150
        $region30: #{tpu_custom_call.1} parent=11 // pred_check_branch
          %216 = sbr.rel (%p214) target = $region32
        $region31: #{tpu_custom_call.1} parent=11 // pred_region
          _
        $region32: #{tpu_custom_call.1} parent=11 // pred_fallthru
          _
      $region12: #{tpu_custom_call.1} parent=5 // pred_fallthru
        _
      %p217 = scmp.lt.s32.totalorder %s19, 2
      // Predicated region
      $region33: #{tpu_custom_call.1} parent=5 // pred_check
        %p218 = pneg %p217
      $region34: #{tpu_custom_call.1} parent=5 // pred_check_branch
        %220 = sbr.rel (%p218) target = $region36
      $region35: #{tpu_custom_call.1} parent=5 // pred_region
        // Predicated region
        $region37: #{tpu_custom_call.1} parent=35 // pred_check
          %p221 = pneg %p60
        $region38: #{tpu_custom_call.1} parent=35 // pred_check_branch
          %223 = sbr.rel (%p221) target = $region40
        $region39: #{tpu_custom_call.1} parent=35 // pred_region
          %s224 = sand.u32 %s50, 1
          %s225 = scalar_lea.sflag [#allocation6], %s224
          %s226 = sand.u32 %s50, 1
          %s227 = smul.addr %s226, 16
          %s228 = scalar_lea.vmem [#allocation5], %s227
          %s229 = smul.u32 2, %s19
          %231 = vsyncadd %s225, 0
          %s232 = smul.addr %s229, 8
          %s233 = scalar_lea.hbm %s1, %s232
          %s235 = sshll.u32 %s233, 4
          %s236 = int_to_ptr.hbm [resolvable:$true] %s235
          %s237 = sshll.u32 %s228, 4
          %s238 = int_to_ptr.vmem [resolvable:$true] %s237
          %240 = dma.hbm_to_vmem [thread:$0]  %s236, 256, %s238, %s225
        $region40: #{tpu_custom_call.1} parent=35 // pred_fallthru
          _
      $region36: #{tpu_custom_call.1} parent=5 // pred_fallthru
        _
      %p241 = scmp.le.s32.totalorder 1, %s19
      %p242 = scmp.lt.s32.totalorder %s19, 3
      %p243 = pnand %p241, %p242
      %p244 = pneg %p243
      // Predicated region
      $region41: #{tpu_custom_call.1} parent=5 // pred_check
        _
      $region42: #{tpu_custom_call.1} parent=5 // pred_check_branch
        %246 = sbr.rel (%p243) target = $region44
      $region43: #{tpu_custom_call.1} parent=5 // pred_region
        %s247 = ssub.s32 %s19, 1
        // Predicated region
        $region45: #{tpu_custom_call.1} parent=43 // pred_check
          %p248 = pneg %p40
        $region46: #{tpu_custom_call.1} parent=43 // pred_check_branch
          %250 = sbr.rel (%p248) target = $region48
        $region47: #{tpu_custom_call.1} parent=43 // pred_region
          %252 = dma.done [#allocation3], 512
        $region48: #{tpu_custom_call.1} parent=43 // pred_fallthru
          _
        %s253 = sand.u32 %s53, 1
        %s254 = scalar_lea.sflag [#allocation6], %s253
        %s255 = sand.u32 %s53, 1
        %s256 = smul.addr %s255, 16
        %s257 = scalar_lea.vmem [#allocation5], %s256
        // Predicated region
        $region49: #{tpu_custom_call.1} parent=43 // pred_check
          %p258 = pneg %p66
        $region50: #{tpu_custom_call.1} parent=43 // pred_check_branch
          %260 = sbr.rel (%p258) target = $region52
        $region51: #{tpu_custom_call.1} parent=43 // pred_region
          %262 = dma.done %s254, 256
        $region52: #{tpu_custom_call.1} parent=43 // pred_fallthru
          _
        %p263 = pneg %p40
        %p264 = pneg %p37
        %s265 = sand.u32 %s53, 1
        %s266 = scalar_lea.sflag [#allocation6], %s265
        %s267 = sand.u32 %s53, 1
        %s268 = smul.addr %s267, 16
        %s269 = scalar_lea.vmem [#allocation5], %s268
        %p270 = pneg %p66
        %p271 = pneg %p63
        %p272 = pneg %p87
        %p273 = pneg %p84
        %p274 = pneg %p108
        %p275 = pneg %p105
        %p276 = pneg %p129
        %p277 = pneg %p126
        %p278 = pneg %p150
        %p279 = pneg %p147
        %p280 = pneg %p176
        %p281 = pneg %p173
        %s282 = sand.u32 %s163, 1
        %s283 = scalar_lea.sflag [#allocation4], %s282
        %s284 = sand.u32 %s163, 1
        %s285 = smul.addr %s284, 16
        %s286 = scalar_lea.vmem [#allocation7], %s285
        %s287 = smul.u32 2, %s24
        %s288 = smul.u32 2, %s24
        %v290 = vld [vmem:[#allocation2] sm:$0xff]
        %v291 = vld [vmem:[#allocation2 + $0x8] sm:$0xff]
        %v292 = vld [vmem:[#allocation2 + $0x10] sm:$0x1]
        %v293 = vld [vmem:[#allocation2 + $0x18] sm:$0x1]
        %v294 = vld [vmem:[%s257] sm:$0xff]
        %v295 = vld [vmem:[%s257 + $0x8] sm:$0xff]
        %296 = vrot.lane.b32.xlu0 %v294, 17
        %v297 = vpop.permute.xlu0 %296
        %298 = vrot.lane.b32.xlu0 %v295, 17
        %v299 = vpop.permute.xlu0 %298
        %v300 = vlaneseq
        %v301 = vand.u32 %v300, 127
        %vm302 = vcmp.lt.s32.totalorder %v301, 17
        %v303 = vsel %vm302, %v297, %v299
        %v304 = vsel %vm302, %v299, %v297
        %v305 = vperm.slane %v290, 0
        %v306 = vperm.slane %v291, 0
        %v307 = vmul.f32 %v304, %v305
        %v308 = vmul.f32 %v303, %v306
        %309 = vrot.lane.b32.xlu0 %v294, 16
        %v310 = vpop.permute.xlu0 %309
        %311 = vrot.lane.b32.xlu0 %v295, 16
        %v312 = vpop.permute.xlu0 %311
        %vm313 = vcmp.lt.s32.totalorder %v301, 16
        %v314 = vsel %vm313, %v310, %v312
        %v315 = vsel %vm313, %v312, %v310
        %v316 = vperm.slane %v290, 1
        %v317 = vperm.slane %v291, 1
        %v318 = vmul.f32 %v315, %v316
        %v319 = vmul.f32 %v314, %v317
        %320 = vrot.lane.b32.xlu0 %v294, 15
        %v321 = vpop.permute.xlu0 %320
        %322 = vrot.lane.b32.xlu0 %v295, 15
        %v323 = vpop.permute.xlu0 %322
        %vm324 = vcmp.lt.s32.totalorder %v301, 15
        %v325 = vsel %vm324, %v321, %v323
        %v326 = vsel %vm324, %v323, %v321
        %v327 = vperm.slane %v290, 2
        %v328 = vperm.slane %v291, 2
        %v329 = vmul.f32 %v326, %v327
        %v330 = vmul.f32 %v325, %v328
        %331 = vrot.lane.b32.xlu0 %v294, 1
        %v332 = vpop.permute.xlu0 %331
        %333 = vrot.lane.b32.xlu0 %v295, 1
        %v334 = vpop.permute.xlu0 %333
        %vm335 = vcmp.lt.s32.totalorder %v301, 1
        %v336 = vsel %vm335, %v332, %v334
        %v337 = vsel %vm335, %v334, %v332
        %v338 = vperm.slane %v290, 3
        %v339 = vperm.slane %v291, 3
        %v340 = vmul.f32 %v337, %v338
        %v341 = vmul.f32 %v336, %v339
        %342 = vrot.lane.b32.xlu0 %v294, 127
        %v343 = vpop.permute.xlu0 %342
        %344 = vrot.lane.b32.xlu0 %v295, 127
        %v345 = vpop.permute.xlu0 %344
        %vm346 = vcmp.lt.s32.totalorder %v301, 127
        %v347 = vsel %vm346, %v343, %v345
        %v348 = vsel %vm346, %v345, %v343
        %v349 = vperm.slane %v290, 5
        %v350 = vperm.slane %v291, 5
        %v351 = vmul.f32 %v347, %v349
        %v352 = vmul.f32 %v348, %v350
        %353 = vrot.lane.b32.xlu0 %v294, 113
        %v354 = vpop.permute.xlu0 %353
        %355 = vrot.lane.b32.xlu0 %v295, 113
        %v356 = vpop.permute.xlu0 %355
        %vm357 = vcmp.lt.s32.totalorder %v301, 113
        %v358 = vsel %vm357, %v354, %v356
        %v359 = vsel %vm357, %v356, %v354
        %v360 = vperm.slane %v290, 6
        %v361 = vperm.slane %v291, 6
        %v362 = vmul.f32 %v358, %v360
        %v363 = vmul.f32 %v359, %v361
        %364 = vrot.lane.b32.xlu0 %v294, 112
        %v365 = vpop.permute.xlu0 %364
        %366 = vrot.lane.b32.xlu0 %v295, 112
        %v367 = vpop.permute.xlu0 %366
        %vm368 = vcmp.lt.s32.totalorder %v301, 112
        %v369 = vsel %vm368, %v365, %v367
        %v370 = vsel %vm368, %v367, %v365
        %v371 = vperm.slane %v290, 7
        %v372 = vperm.slane %v291, 7
        %v373 = vmul.f32 %v369, %v371
        %v374 = vmul.f32 %v370, %v372
        %375 = vrot.lane.b32.xlu0 %v294, 111
        %v376 = vpop.permute.xlu0 %375
        %377 = vrot.lane.b32.xlu0 %v295, 111
        %v378 = vpop.permute.xlu0 %377
        %vm379 = vcmp.lt.s32.totalorder %v301, 111
        %v380 = vsel %vm379, %v376, %v378
        %v381 = vsel %vm379, %v378, %v376
        %v382 = vperm.slane %v292, 0
        %v383 = vperm.slane %v293, 0
        %v384 = vmul.f32 %v380, %v382
        %v385 = vmul.f32 %v381, %v383
        %v386 = vld [vmem:[%s2] sm:$0xf]
        %v387 = vpack.c.bf16 %v318, %v307
        %v388 = vpack.c.bf16 %v319, %v308
        %v389 = vpack.c.bf16 %v340, %v329
        %v390 = vpack.c.bf16 %v341, %v330
        %v391 = vpack.c.bf16 %v351, %v294
        %v392 = vpack.c.bf16 %v352, %v295
        %v393 = vpack.c.bf16 %v373, %v362
        %v394 = vpack.c.bf16 %v374, %v363
        %v395 = vpack.c.bf16 %v384, %v384
        %v396 = vpack.c.bf16 %v385, %v385
        %v397 = vld [vmem:[%s3] sm:$0xff]
        %399 = vset.pattern.permute.xlu0 0
        %400 = vperm.xlu0 %399, %v397
        %v401 = vpop.permute.xlu0 %400
        %vm403 = vcmask 588800
        %v405 = vsel %vm403, %v386, 0
        %vm407 = vcmask 1043456
        %v409 = vsel %vm407, %v395, 0
        %v412 = vsel %vm407, %v396, 0
        %414 = vmatpush.bf16.msra.mxu0 0
        %415 = vmatpush.bf16.msra.mxu0 0
        %416 = vmatpush.bf16.msra.mxu0 0
        %417 = vmatpush.bf16.msra.mxu0 %v409
        %418 = vmatpush.bf16.msra.mxu0 %v393
        %419 = vmatpush.bf16.msra.mxu0 %v391
        %420 = vmatpush.bf16.msra.mxu0 %v389
        %421 = vmatpush.bf16.msra.mxu0 %v387
        %422 = vmatmul.bf16.gmra.mxu0 %v405
        %v423 = vpop.f32.mrf.mxu0
        %v424 = vadd.f32 %v401, %v423
        %v425 = vpop.f32.mrf.mxu0
        %426 = vdwg.mxu0
        %427 = vmatpush.bf16.msra.mxu0 0
        %428 = vmatpush.bf16.msra.mxu0 0
        %429 = vmatpush.bf16.msra.mxu0 0
        %430 = vmatpush.bf16.msra.mxu0 %v412
        %431 = vmatpush.bf16.msra.mxu0 %v394
        %432 = vmatpush.bf16.msra.mxu0 %v392
        %433 = vmatpush.bf16.msra.mxu0 %v390
        %434 = vmatpush.bf16.msra.mxu0 %v388
        %435 = vmatmul.bf16.gmra.mxu0 %v405
        %v436 = vpop.f32.mrf.mxu0
        %v437 = vadd.f32 %v401, %v436
        %v438 = vpop.f32.mrf.mxu0
        %439 = vdwg.mxu0
        %v440 = vmax.f32 %v424, 0.0
        %v441 = vmax.f32 %v437, 0.0
        %442 = vrot.lane.b32.xlu0 %v440, 17
        %v443 = vpop.permute.xlu0 %442
        %444 = vrot.lane.b32.xlu0 %v441, 17
        %v445 = vpop.permute.xlu0 %444
        %v446 = vsel %vm302, %v443, %v445
        %v447 = vsel %vm302, %v445, %v443
        %v448 = vmul.f32 %v447, %v305
        %v449 = vmul.f32 %v446, %v306
        %450 = vrot.lane.b32.xlu0 %v440, 16
        %v451 = vpop.permute.xlu0 %450
        %452 = vrot.lane.b32.xlu0 %v441, 16
        %v453 = vpop.permute.xlu0 %452
        %v454 = vsel %vm313, %v451, %v453
        %v455 = vsel %vm313, %v453, %v451
        %v456 = vmul.f32 %v455, %v316
        %v457 = vmul.f32 %v454, %v317
        %458 = vrot.lane.b32.xlu0 %v440, 15
        %v459 = vpop.permute.xlu0 %458
        %460 = vrot.lane.b32.xlu0 %v441, 15
        %v461 = vpop.permute.xlu0 %460
        %v462 = vsel %vm324, %v459, %v461
        %v463 = vsel %vm324, %v461, %v459
        %v464 = vmul.f32 %v463, %v327
        %v465 = vmul.f32 %v462, %v328
        %466 = vrot.lane.b32.xlu0 %v440, 1
        %v467 = vpop.permute.xlu0 %466
        %468 = vrot.lane.b32.xlu0 %v441, 1
        %v469 = vpop.permute.xlu0 %468
        %v470 = vsel %vm335, %v467, %v469
        %v471 = vsel %vm335, %v469, %v467
        %v472 = vmul.f32 %v471, %v338
        %v473 = vmul.f32 %v470, %v339
        %474 = vrot.lane.b32.xlu0 %v440, 127
        %v475 = vpop.permute.xlu0 %474
        %476 = vrot.lane.b32.xlu0 %v441, 127
        %v477 = vpop.permute.xlu0 %476
        %v478 = vsel %vm346, %v475, %v477
        %v479 = vsel %vm346, %v477, %v475
        %v480 = vmul.f32 %v478, %v349
        %v481 = vmul.f32 %v479, %v350
        %482 = vrot.lane.b32.xlu0 %v440, 113
        %v483 = vpop.permute.xlu0 %482
        %484 = vrot.lane.b32.xlu0 %v441, 113
        %v485 = vpop.permute.xlu0 %484
        %v486 = vsel %vm357, %v483, %v485
        %v487 = vsel %vm357, %v485, %v483
        %v488 = vmul.f32 %v486, %v360
        %v489 = vmul.f32 %v487, %v361
        %490 = vrot.lane.b32.xlu0 %v440, 112
        %v491 = vpop.permute.xlu0 %490
        %492 = vrot.lane.b32.xlu0 %v441, 112
        %v493 = vpop.permute.xlu0 %492
        %v494 = vsel %vm368, %v491, %v493
        %v495 = vsel %vm368, %v493, %v491
        %v496 = vmul.f32 %v494, %v371
        %v497 = vmul.f32 %v495, %v372
        %498 = vrot.lane.b32.xlu0 %v440, 111
        %v499 = vpop.permute.xlu0 %498
        %500 = vrot.lane.b32.xlu0 %v441, 111
        %v501 = vpop.permute.xlu0 %500
        %v502 = vsel %vm379, %v499, %v501
        %v503 = vsel %vm379, %v501, %v499
        %v504 = vmul.f32 %v502, %v382
        %v505 = vmul.f32 %v503, %v383
        %v506 = vld [vmem:[%s4] sm:$0xf]
        %v507 = vpack.c.bf16 %v456, %v448
        %v508 = vpack.c.bf16 %v457, %v449
        %v509 = vpack.c.bf16 %v472, %v464
        %v510 = vpack.c.bf16 %v473, %v465
        %v511 = vpack.c.bf16 %v480, %v440
        %v512 = vpack.c.bf16 %v481, %v441
        %v513 = vpack.c.bf16 %v496, %v488
        %v514 = vpack.c.bf16 %v497, %v489
        %v515 = vpack.c.bf16 %v504, %v504
        %v516 = vpack.c.bf16 %v505, %v505
        %v517 = vld [vmem:[%s5] sm:$0xff]
        %519 = vset.pattern.permute.xlu0 0
        %520 = vperm.xlu0 %519, %v517
        %v521 = vpop.permute.xlu0 %520
        %v524 = vsel %vm403, %v506, 0
        %v527 = vsel %vm407, %v515, 0
        %v530 = vsel %vm407, %v516, 0
        %532 = vmatpush.bf16.msra.mxu0 0
        %533 = vmatpush.bf16.msra.mxu0 0
        %534 = vmatpush.bf16.msra.mxu0 0
        %535 = vmatpush.bf16.msra.mxu0 %v527
        %536 = vmatpush.bf16.msra.mxu0 %v513
        %537 = vmatpush.bf16.msra.mxu0 %v511
        %538 = vmatpush.bf16.msra.mxu0 %v509
        %539 = vmatpush.bf16.msra.mxu0 %v507
        %540 = vmatmul.bf16.gmra.mxu0 %v524
        %v541 = vpop.f32.mrf.mxu0
        %v542 = vadd.f32 %v521, %v541
        %v543 = vpop.f32.mrf.mxu0
        %544 = vdwg.mxu0
        %545 = vmatpush.bf16.msra.mxu0 0
        %546 = vmatpush.bf16.msra.mxu0 0
        %547 = vmatpush.bf16.msra.mxu0 0
        %548 = vmatpush.bf16.msra.mxu0 %v530
        %549 = vmatpush.bf16.msra.mxu0 %v514
        %550 = vmatpush.bf16.msra.mxu0 %v512
        %551 = vmatpush.bf16.msra.mxu0 %v510
        %552 = vmatpush.bf16.msra.mxu0 %v508
        %553 = vmatmul.bf16.gmra.mxu0 %v524
        %v554 = vpop.f32.mrf.mxu0
        %v555 = vadd.f32 %v521, %v554
        %v556 = vpop.f32.mrf.mxu0
        %557 = vdwg.mxu0
        %v558 = vadd.f32 %v542, %v294
        %v559 = vadd.f32 %v555, %v295
        %v560 = vmax.f32 %v558, 0.0
        %v561 = vmax.f32 %v559, 0.0
        %562 = vst [vmem:[%s286] sm:$0xff] %v560
        %563 = vst [vmem:[%s286 + $0x8] sm:$0xff] %v561
        %s564 = sand.u32 %s163, 1
        %s565 = scalar_lea.sflag [#allocation4], %s564
        %s566 = sand.u32 %s163, 1
        %s567 = smul.addr %s566, 16
        %s568 = scalar_lea.vmem [#allocation7], %s567
        // Predicated region
        $region53: #{tpu_custom_call.1} parent=43 // pred_check
          %p569 = pneg %p173
        $region54: #{tpu_custom_call.1} parent=43 // pred_check_branch
          %571 = sbr.rel (%p569) target = $region56
        $region55: #{tpu_custom_call.1} parent=43 // pred_region
          %s572 = smul.u32 2, %s24
          %574 = vsyncadd %s565, 0
          %s575 = smul.addr %s572, 8
          %s576 = scalar_lea.hbm %s6, %s575
          %s578 = sshll.u32 %s568, 4
          %s579 = int_to_ptr.vmem [resolvable:$true] %s578
          %s580 = sshll.u32 %s576, 4
          %s581 = int_to_ptr.hbm [resolvable:$true] %s580
          %583 = dma.vmem_to_hbm [thread:$0]  %s579, 256, %s581, %s565
        $region56: #{tpu_custom_call.1} parent=43 // pred_fallthru
          _
      $region44: #{tpu_custom_call.1} parent=5 // pred_fallthru
        _
      %p584 = scmp.le.s32.totalorder 2, %s19
      // Predicated region
      $region57: #{tpu_custom_call.1} parent=5 // pred_check
        %p585 = pneg %p584
      $region58: #{tpu_custom_call.1} parent=5 // pred_check_branch
        %587 = sbr.rel (%p585) target = $region60
      $region59: #{tpu_custom_call.1} parent=5 // pred_region
        %s588 = ssub.s32 %s19, 2
        // Predicated region
        $region61: #{tpu_custom_call.1} parent=59 // pred_check
          %p589 = pneg %p179
        $region62: #{tpu_custom_call.1} parent=59 // pred_check_branch
          %591 = sbr.rel (%p589) target = $region64
        $region63: #{tpu_custom_call.1} parent=59 // pred_region
          %s592 = sand.u32 %s164, 1
          %s593 = scalar_lea.sflag [#allocation4], %s592
          %s594 = sand.u32 %s164, 1
          %s595 = smul.addr %s594, 16
          %s596 = scalar_lea.vmem [#allocation7], %s595
          %598 = dma.done %s593, 256
        $region64: #{tpu_custom_call.1} parent=59 // pred_fallthru
          _
      $region60: #{tpu_custom_call.1} parent=5 // pred_fallthru
        _
    $region6: #{tpu_custom_call.1} parent=1 // loop_footer
      %s23 = sadd.s32 1, %s19
    $region7: #{tpu_custom_call.1} parent=1 // loop_footer_branch
      %18 = sbr.rel target = $region3
    $region8: #{tpu_custom_call.1} parent=1 // loop_exit
      _
    %599 = vsyncpa [#allocation3], 1
    %s600 = scalar_lea.sflag [#allocation3], 1
    %601 = vsyncpa %s600, 1
    %602 = vsyncpa [#allocation6], 1
    %s603 = scalar_lea.sflag [#allocation6], 1
    %604 = vsyncpa %s603, 1
    %605 = vsyncpa [#allocation4], 1
    %s606 = scalar_lea.sflag [#allocation4], 1
    %607 = vsyncpa %s606, 1

</llo_original>
